<compile_context>
chip_gen: v5e
topology: v5e:2x2
jax: 0.10.0
libtpu: 0.0.40
codegen_flags: <defaults>
</compile_context>

<pallas_src>
import math

import jax
import jax.numpy as jnp
from jax.experimental import pallas as pl
from jax.experimental.pallas import tpu as pltpu


def _round_up(x, m):
    return ((x + m - 1) // m) * m


def _pick_tile(size, align, max_tile):
    """Largest multiple of `align` that divides round_up(size, align) and is
    <= max_tile, so no padding beyond alignment is ever introduced."""
    padded = _round_up(size, align)
    best = align
    t = align
    limit = min(max_tile, padded)
    while t <= limit:
        if padded % t == 0:
            best = t
        t += align
    return best, padded


def _linear_kernel_single(x_ref, w_ref, b_ref, o_ref):
    # Whole K fits in one tile: no accumulator scratch, no phase gating.
    o_ref[...] = (
        jnp.dot(x_ref[...], w_ref[...], preferred_element_type=jnp.float32)
        + b_ref[...]
    ).astype(o_ref.dtype)


def _linear_kernel_acc(x_ref, w_ref, b_ref, o_ref, acc_ref):
    # x_ref: (tm, tk), w_ref: (tk, tn), b_ref: (1, tn), o_ref: (tm, tn)
    k = pl.program_id(2)

    @pl.when(k == 0)
    def _():
        acc_ref[...] = jnp.zeros_like(acc_ref)

    acc_ref[...] += jnp.dot(
        x_ref[...], w_ref[...], preferred_element_type=jnp.float32
    )

    @pl.when(k == pl.num_programs(2) - 1)
    def _():
        # Bias added exactly once, on the final K step.
        o_ref[...] = (acc_ref[...] + b_ref[...]).astype(o_ref.dtype)


def recording_linear(
    x,
    weight_t,
    bias,
    *,
    max_tm=256,
    max_tn=256,
    max_tk=1024,
    compute_dtype=None,
    vmem_limit_bytes=48 * 1024 * 1024,
):
    """Pallas forward for nn.Linear: y = x @ weight_t + bias.

    x:        (M, K) float32
    weight_t: (K, N) float32  (torch weight (N, K) transposed)
    bias:     (N,)   float32
    returns   (M, N) float32
    """
    M, K = x.shape
    Kw, N = weight_t.shape
    assert K == Kw, "x / weight shape mismatch"

    if compute_dtype is None:
        compute_dtype = jnp.float32

    # Sublane alignment: 8 for 32-bit, 16 for 16-bit packed operands.
    sub_align = 8 if jnp.dtype(compute_dtype).itemsize >= 4 else 16
    tm, Mp = _pick_tile(M, sub_align, max_tm)
    tn, Np = _pick_tile(N, 128, max_tn)
    tk, Kp = _pick_tile(K, 128, max_tk)

    x_c = x.astype(compute_dtype)
    w_c = weight_t.astype(compute_dtype)
    if (Mp, Kp) != (M, K):
        x_c = jnp.pad(x_c, ((0, Mp - M), (0, Kp - K)))
    if (Kp, Np) != (K, N):
        w_c = jnp.pad(w_c, ((0, Kp - K), (0, Np - N)))
    b_c = bias.astype(jnp.float32)
    if Np != N:
        b_c = jnp.pad(b_c, (0, Np - N))
    b_c = b_c.reshape(1, Np)

    cost = pl.CostEstimate(
        flops=2 * M * K * N + M * N,
        transcendentals=0,
        bytes_accessed=4 * (M * K + K * N + M * N + N),
    )

    n_k = Kp // tk
    if n_k == 1:
        # Single-K fast path: 2-D grid, write result directly.
        out_padded = pl.pallas_call(
            _linear_kernel_single,
            out_shape=jax.ShapeDtypeStruct((Mp, Np), jnp.float32),
            grid_spec=pltpu.PrefetchScalarGridSpec(
                num_scalar_prefetch=0,
                grid=(Mp // tm, Np // tn),
                in_specs=[
                    pl.BlockSpec((tm, tk), lambda i, j: (i, 0)),  # x tile
                    pl.BlockSpec((tk, tn), lambda i, j: (0, j)),  # weight tile
                    pl.BlockSpec((1, tn), lambda i, j: (0, j)),   # bias tile
                ],
                out_specs=pl.BlockSpec((tm, tn), lambda i, j: (i, j)),
            ),
            compiler_params=pltpu.CompilerParams(
                dimension_semantics=("parallel", "parallel"),
                vmem_limit_bytes=vmem_limit_bytes,
            ),
            cost_estimate=cost,
        )(x_c, w_c, b_c)
    else:
        # General (M, N, K)-tiled path with a resident f32 accumulator.
        out_padded = pl.pallas_call(
            _linear_kernel_acc,
            out_shape=jax.ShapeDtypeStruct((Mp, Np), jnp.float32),
            grid_spec=pltpu.PrefetchScalarGridSpec(
                num_scalar_prefetch=0,
                grid=(Mp // tm, Np // tn, n_k),
                in_specs=[
                    pl.BlockSpec((tm, tk), lambda i, j, k: (i, k)),  # x tile
                    pl.BlockSpec((tk, tn), lambda i, j, k: (k, j)),  # weight tile
                    pl.BlockSpec((1, tn), lambda i, j, k: (0, j)),   # bias tile
                ],
                out_specs=pl.BlockSpec((tm, tn), lambda i, j, k: (i, j)),
                scratch_shapes=[pltpu.VMEM((tm, tn), jnp.float32)],
            ),
            compiler_params=pltpu.CompilerParams(
                dimension_semantics=("parallel", "parallel", "arbitrary"),
                vmem_limit_bytes=vmem_limit_bytes,
            ),
            cost_estimate=cost,
        )(x_c, w_c, b_c)

    if (Mp, Np) != (M, N):
        out_padded = out_padded[:M, :N]
    return out_padded


def init_linear_params(key, in_features, out_features):
    """Deterministic init mirroring torch.nn.Linear defaults."""
    kw, kb = jax.random.split(key)
    bound = 1.0 / math.sqrt(in_features)
    # torch stores weight as (out, in); we keep the transposed (in, out) layout.
    w_pt = jax.random.uniform(
        kw, (out_features, in_features), jnp.float32, -bound, bound
    )
    b = jax.random.uniform(kb, (out_features,), jnp.float32, -bound, bound)
    return w_pt.T, b


if __name__ == "__main__":
    # TODO(synk): the Python-side `log.append(...)` side effect (timestamps,
    # tensor capture) has no Pallas equivalent; only the linear math is ported.
    key = jax.random.PRNGKey(0)
    k_x, k_p, k_x2, k_p2, k_x3, k_p3 = jax.random.split(key, 6)

    # --- small demo shape matching the module (batch=8, in=32, out=16) ---
    batch, in_dim, out_dim = 8, 32, 16
    x = jax.random.normal(k_x, (batch, in_dim), jnp.float32)
    weight_t, bias = init_linear_params(k_p, in_dim, out_dim)

    y = jax.block_until_ready(recording_linear(x, weight_t, bias))
    y_ref = x @ weight_t + bias
    assert y.shape == (batch, out_dim)
    assert jnp.allclose(y, y_ref, atol=1e-5, rtol=1e-5)

    # --- medium ragged shape (multiple M/N tiles, K handled in one tile:
    #     exercises the single-K fast path) ---
    M2, K2, N2 = 512, 768, 384
    x2 = jax.random.normal(k_x2, (M2, K2), jnp.float32)
    w2_t, b2 = init_linear_params(k_p2, K2, N2)

    y2 = jax.block_until_ready(recording_linear(x2, w2_t, b2))
    y2_ref = x2 @ w2_t + b2
    assert y2.shape == (M2, N2)
    assert jnp.allclose(y2, y2_ref, atol=1e-4, rtol=1e-4)

    # --- large-K shape that exercises the multi-K accumulator path ---
    M3, K3, N3 = 256, 2048, 512
    x3 = jax.random.normal(k_x3, (M3, K3), jnp.float32)
    w3_t, b3 = init_linear_params(k_p3, K3, N3)

    y3 = jax.block_until_ready(recording_linear(x3, w3_t, b3))
    y3_ref = x3 @ w3_t + b3
    assert y3.shape == (M3, N3)
    assert jnp.allclose(y3, y3_ref, atol=5e-4, rtol=5e-4)

    # --- bf16-operand / f32-accumulate path (v6e/v7x MXU peak) ---
    y2_bf16 = jax.block_until_ready(
        recording_linear(x2, w2_t, b2, compute_dtype=jnp.bfloat16)
    )
    y2_bf16_ref = (
        jnp.dot(
            x2.astype(jnp.bfloat16),
            w2_t.astype(jnp.bfloat16),
            preferred_element_type=jnp.float32,
        )
        + b2
    )
    assert jnp.allclose(y2_bf16, y2_bf16_ref, atol=5e-2, rtol=5e-2)

    print("KERNEL_OK")
</pallas_src>

<mosaic_0001>
module attributes {stable_mosaic.version = 11 : i64} {
  func.func @_linear_kernel_single(%arg0: i32, %arg1: i32, %arg2: memref<8x128xf32, #tpu.memory_space<vmem>>, %arg3: memref<128x128xf32, #tpu.memory_space<vmem>>, %arg4: memref<1x128xf32, #tpu.memory_space<vmem>>, %arg5: memref<8x128xf32, #tpu.memory_space<vmem>>) attributes {dimension_semantics = [#tpu.dimension_semantics<parallel>, #tpu.dimension_semantics<parallel>], iteration_bounds = array<i64: 1, 1>, scalar_prefetch = 0 : i64, scratch_operands = 0 : i64, tpu.core_type = #tpu.core_type<tc>, window_params = [{transform_indices = @transform_0, window_bounds = array<i64: 8, 128>}, {transform_indices = @transform_1, window_bounds = array<i64: 128, 128>}, {transform_indices = @transform_2, window_bounds = array<i64: 1, 128>}, {transform_indices = @transform_3, window_bounds = array<i64: 8, 128>}]} {
    %c0 = arith.constant 0 : index
    %c0_0 = arith.constant 0 : index
    %0 = vector.load %arg2[%c0, %c0_0] : memref<8x128xf32, #tpu.memory_space<vmem>>, vector<8x128xf32>
    %c0_1 = arith.constant 0 : index
    %c0_2 = arith.constant 0 : index
    %1 = vector.load %arg3[%c0_1, %c0_2] : memref<128x128xf32, #tpu.memory_space<vmem>>, vector<128x128xf32>
    %cst = arith.constant dense<0.000000e+00> : vector<8x128xf32>
    %2 = tpu.matmul %0, %1, %cst {dimension_numbers = #tpu.dot_dimension_numbers<[1], [0], [0], [1], [0, 0, 1, 1], [], []>} : vector<8x128xf32>, vector<128x128xf32>, vector<8x128xf32> -> vector<8x128xf32>
    %c0_3 = arith.constant 0 : index
    %c0_4 = arith.constant 0 : index
    %3 = vector.load %arg4[%c0_3, %c0_4] : memref<1x128xf32, #tpu.memory_space<vmem>>, vector<1x128xf32>
    %4 = vector.broadcast %3 : vector<1x128xf32> to vector<8x128xf32>
    %5 = arith.addf %2, %4 : vector<8x128xf32>
    %c0_5 = arith.constant 0 : index
    %c0_6 = arith.constant 0 : index
    %6 = vector.load %arg5[%c0_5, %c0_6] : memref<8x128xf32, #tpu.memory_space<vmem>>, vector<8x128xf32>
    tpu.vector_store %arg5[%c0_5, %c0_6], %5 {strides = array<i32>} : memref<8x128xf32, #tpu.memory_space<vmem>>, vector<8x128xf32>,
    return
  }
  func.func @transform_0(%arg0: i32, %arg1: i32) -> (i32, i32) {
    %c0_i32 = arith.constant 0 : i32
    %c0_i32_0 = arith.constant 0 : i32
    return %arg0, %c0_i32 : i32, i32
  }
  func.func @transform_1(%arg0: i32, %arg1: i32) -> (i32, i32) {
    %c0_i32 = arith.constant 0 : i32
    %c0_i32_0 = arith.constant 0 : i32
    return %c0_i32, %arg1 : i32, i32
  }
  func.func @transform_2(%arg0: i32, %arg1: i32) -> (i32, i32) {
    %c0_i32 = arith.constant 0 : i32
    %c0_i32_0 = arith.constant 0 : i32
    return %c0_i32, %arg1 : i32, i32
  }
  func.func @transform_3(%arg0: i32, %arg1: i32) -> (i32, i32) {
    %c0_i32 = arith.constant 0 : i32
    return %arg0, %arg1 : i32, i32
  }
}

</mosaic_0001>

<llo_original>
// kernel: tpu_custom_call.1
$region0: #{tpu_custom_call.1}
  #allocation0 [shape = 'u32[]', space=smem, size = 0x4, offset = 0x4, fixed_abs, tag = 'smem constant byte address 0x4 - core index']
  #allocation1 [shape = 'u32[72,128]{1,0:T(1,128)}', space=vmem, size = 0x9000, scoped, tag = 'internal scratch']
  %s0 = inlined_call_operand.hbm [shape: f32[8,128], index: 0, kind: input, shape index: {}]
  %s1 = inlined_call_operand.hbm [shape: f32[128,128], index: 1, kind: input, shape index: {}]
  %s2 = inlined_call_operand.vmem [shape: f32[1,128], index: 2, kind: input, shape index: {}]
  %s3 = inlined_call_operand.hbm [shape: f32[8,128], index: 3, kind: output, shape index: {}]
  %s4 = sld [smem:[#allocation0]]
  $region30: #{tpu_custom_call.1} parent=0
    _
  %s6 = ssub.s32 1, %s4
  %s7 = scalar_select 0, %s6, %s4
  $region1: #{tpu_custom_call.1} parent=0
    #allocation2 [shape = 'u8[4096]{0}', space=vmem, size = 0x1000, scoped, tag = 'input window, operand 0, single buffered']
    #allocation3 [shape = 's32[1]{0}', space=sflag, size = 0x4, scoped, tag = 'scoped memory for tpu_custom_call.1']
    #allocation4 [shape = 's32[1]{0}', space=sflag, size = 0x4, scoped, tag = 'scoped memory for tpu_custom_call.1']
    #allocation5 [shape = 'u8[65536]{0}', space=vmem, size = 0x10000, scoped, tag = 'input window, operand 1, single buffered']
    #allocation6 [shape = 's32[1]{0}', space=sflag, size = 0x4, scoped, tag = 'scoped memory for tpu_custom_call.1']
    #allocation7 [shape = 'u8[4096]{0}', space=vmem, size = 0x1000, scoped, tag = 'output window, operand 0, single buffered']
    %8 = vsyncpa [#allocation3], 0
    %9 = vsyncpa [#allocation6], 0
    %10 = vsyncpa [#allocation4], 0
    // Predicated region
    $region2: #{tpu_custom_call.1} parent=1 // pred_check
      _
    $region3: #{tpu_custom_call.1} parent=1 // pred_check_branch
      %12 = sbr.rel (0) target = $region5
    $region4: #{tpu_custom_call.1} parent=1 // pred_region
      %14 = vsyncadd [#allocation3], 0
      %s16 = sshll.u32 %s0, 4
      %s17 = int_to_ptr.hbm [resolvable:$true] %s16
      %s18 = sshll.u32 [#allocation2], 4
      %s19 = int_to_ptr.vmem [resolvable:$true] %s18
      %21 = dma.hbm_to_vmem [thread:$0]  %s17, 128, %s19, [#allocation3]
    $region5: #{tpu_custom_call.1} parent=1 // pred_fallthru
      _
    // Predicated region
    $region6: #{tpu_custom_call.1} parent=1 // pred_check
      _
    $region7: #{tpu_custom_call.1} parent=1 // pred_check_branch
      %23 = sbr.rel (0) target = $region9
    $region8: #{tpu_custom_call.1} parent=1 // pred_region
      %25 = vsyncadd [#allocation6], 0
      %s26 = sshll.u32 %s1, 4
      %s27 = int_to_ptr.hbm [resolvable:$true] %s26
      %s28 = sshll.u32 [#allocation5], 4
      %s29 = int_to_ptr.vmem [resolvable:$true] %s28
      %34 = dma.hbm_to_vmem [thread:$0]  %s27, 2048, %s29, [#allocation6], 128, 128, 8
    $region9: #{tpu_custom_call.1} parent=1 // pred_fallthru
      _
    // Predicated region
    $region10: #{tpu_custom_call.1} parent=1 // pred_check
      _
    $region11: #{tpu_custom_call.1} parent=1 // pred_check_branch
      %36 = sbr.rel (0) target = $region13
    $region12: #{tpu_custom_call.1} parent=1 // pred_region
      _
    $region13: #{tpu_custom_call.1} parent=1 // pred_fallthru
      _
    // Predicated region
    $region14: #{tpu_custom_call.1} parent=1 // pred_check
      _
    $region15: #{tpu_custom_call.1} parent=1 // pred_check_branch
      %38 = sbr.rel (0) target = $region17
    $region16: #{tpu_custom_call.1} parent=1 // pred_region
      %40 = dma.done [#allocation3], 128
    $region17: #{tpu_custom_call.1} parent=1 // pred_fallthru
      _
    // Predicated region
    $region18: #{tpu_custom_call.1} parent=1 // pred_check
      _
    $region19: #{tpu_custom_call.1} parent=1 // pred_check_branch
      %42 = sbr.rel (0) target = $region21
    $region20: #{tpu_custom_call.1} parent=1 // pred_region
      %44 = dma.done [#allocation6], 2048
    $region21: #{tpu_custom_call.1} parent=1 // pred_fallthru
      _
    %v45 = vld [vmem:[#allocation2] sm:$0xff]
    %v46 = vld [vmem:[#allocation5] sm:$0xff]
    %v47 = vld [vmem:[#allocation5 + $0x8] sm:$0xff]
    %v48 = vld [vmem:[#allocation5 + $0x10] sm:$0xff]
    %v49 = vld [vmem:[#allocation5 + $0x18] sm:$0xff]
    %v50 = vld [vmem:[#allocation5 + $0x20] sm:$0xff]
    %v51 = vld [vmem:[#allocation5 + $0x28] sm:$0xff]
    %v52 = vld [vmem:[#allocation5 + $0x30] sm:$0xff]
    %v53 = vld [vmem:[#allocation5 + $0x38] sm:$0xff]
    %v54 = vld [vmem:[#allocation5 + $0x40] sm:$0xff]
    %v55 = vld [vmem:[#allocation5 + $0x48] sm:$0xff]
    %v56 = vld [vmem:[#allocation5 + $0x50] sm:$0xff]
    %v57 = vld [vmem:[#allocation5 + $0x58] sm:$0xff]
    %v58 = vld [vmem:[#allocation5 + $0x60] sm:$0xff]
    %v59 = vld [vmem:[#allocation5 + $0x68] sm:$0xff]
    %v60 = vld [vmem:[#allocation5 + $0x70] sm:$0xff]
    %v61 = vld [vmem:[#allocation5 + $0x78] sm:$0xff]
    %v62 = vld [vmem:[%s2] sm:$0x1]
    %v64 = vperm.slane %v62, 0
    %66 = vmatpush.msra.mxu0 %v61
    %67 = vmatpush.msra.mxu0 %v60
    %68 = vmatpush.msra.mxu0 %v59
    %69 = vmatpush.msra.mxu0 %v58
    %70 = vmatpush.msra.mxu0 %v57
    %71 = vmatpush.msra.mxu0 %v56
    %72 = vmatpush.msra.mxu0 %v55
    %73 = vmatpush.msra.mxu0 %v54
    %74 = vmatpush.msra.mxu0 %v53
    %75 = vmatpush.msra.mxu0 %v52
    %76 = vmatpush.msra.mxu0 %v51
    %77 = vmatpush.msra.mxu0 %v50
    %78 = vmatpush.msra.mxu0 %v49
    %79 = vmatpush.msra.mxu0 %v48
    %80 = vmatpush.msra.mxu0 %v47
    %81 = vmatpush.msra.mxu0 %v46
    %82 = vmatmul.f32.gmra.mxu0 %v45
    %v83 = vpop.f32.mrf.mxu0
    %v84 = vadd.f32 %v64, %v83
    %85 = vdwg.mxu0
    %86 = vst [vmem:[#allocation7] sm:$0xff] %v84
    // Predicated region
    $region22: #{tpu_custom_call.1} parent=1 // pred_check
      _
    $region23: #{tpu_custom_call.1} parent=1 // pred_check_branch
      %88 = sbr.rel (0) target = $region25
    $region24: #{tpu_custom_call.1} parent=1 // pred_region
      %90 = vsyncadd [#allocation4], 0
      %s92 = sshll.u32 [#allocation7], 4
      %s93 = int_to_ptr.vmem [resolvable:$true] %s92
      %s94 = sshll.u32 %s3, 4
      %s95 = int_to_ptr.hbm [resolvable:$true] %s94
      %97 = dma.vmem_to_hbm [thread:$0]  %s93, 128, %s95, [#allocation4]
    $region25: #{tpu_custom_call.1} parent=1 // pred_fallthru
      _
    // Predicated region
    $region26: #{tpu_custom_call.1} parent=1 // pred_check
      _
    $region27: #{tpu_custom_call.1} parent=1 // pred_check_branch
      %99 = sbr.rel (0) target = $region29
    $region28: #{tpu_custom_call.1} parent=1 // pred_region
      %101 = dma.done [#allocation4], 128
    $region29: #{tpu_custom_call.1} parent=1 // pred_fallthru
      _
    %102 = vsyncpa [#allocation3], 1
    %103 = vsyncpa [#allocation6], 1
    %104 = vsyncpa [#allocation4], 1

</llo_original>
